<compile_context>
chip_gen: v7x
topology: tpu7x:2x2x1
jax: 0.10.0
libtpu: 0.0.40
codegen_flags: <defaults>
</compile_context>

<pallas_src>
import jax
import jax.numpy as jnp
from jax.experimental import pallas as pl
from jax.experimental.pallas import tpu as pltpu

LANE = 128  # vreg lane width


def _round_up(x, m):
    return ((x + m - 1) // m) * m


def attn_decoder_kernel(tok_ref,      # SMEM (N,) int32   scalar prefetch (drives the index_maps)
                        emb_ref,      # VMEM (1,1,H)      embedded token row for this step
                        h0_ref,       # VMEM (1,H)        initial hidden (read at step 0 only)
                        w_gru_ref,    # VMEM (2H,4H)      rows [x; h], cols [r | z | n_in | n_h]
                        w_hnew_ref,   # VMEM (H,128+Hp)   [attn logits (lanes 0:128) | wco]
                        enc_wca_ref,  # VMEM (L,H)        encoder_outputs @ wca (step-invariant)
                        w_fc_ref,     # VMEM (H,O)
                        bias_ref,     # VMEM (4,BW)       rows: b_gru | b_attn | b_comb | b_fc
                        out_ref,      # VMEM (1,1,SLAB_W) packed [fc_out | h_new | attn_w]
                        h_scr):       # VMEM (1,H) f32    hidden carried across grid steps
    f32 = jnp.float32
    H = h_scr.shape[-1]
    L = enc_wca_ref.shape[0]
    O = w_fc_ref.shape[-1]

    @pl.when(pl.program_id(0) == 0)
    def _():
        h_scr[...] = h0_ref[...].astype(f32)

    def mm(a, b):
        return jnp.dot(a, b, preferred_element_type=f32)

    x = emb_ref[0].astype(f32)   # (1, H) embedded token; dropout == identity (eval semantics)
    h = h_scr[...]               # (1, H) hidden, VMEM-resident across steps

    # --- GRU cell.  x@Wx and h@Wh are independent MXU pushes; packed gate columns
    # [r | z | n_in | n_h] keep b_hn inside the r*(.) term exactly as PyTorch computes it.
    g = mm(x, w_gru_ref[0:H, :]) + mm(h, w_gru_ref[H:2 * H, :]) + bias_ref[0:1, 0:4 * H]
    r = jax.nn.sigmoid(g[:, 0:H])
    z = jax.nn.sigmoid(g[:, H:2 * H])
    n = jnp.tanh(g[:, 2 * H:3 * H] + r * g[:, 3 * H:4 * H])
    h_new = (1.0 - z) * n + z * h          # GRU output == new hidden (seq_len == n_layers == 1)

    # --- everything that consumes h_new as LHS in one matmul; both result slices start on a
    # 128-lane (vreg) boundary so no XLU lane compaction lands on the serial chain.
    t = mm(h_new, w_hnew_ref[...])                       # (1, 128 + Hp)
    logits = t[:, 0:L] + bias_ref[1:2, 0:L]
    comb_h = t[:, LANE:LANE + H]

    # --- softmax over L lanes (exact divide: single-scalar denominator, perf-neutral).
    e = jnp.exp(logits - jnp.max(logits, axis=-1, keepdims=True))
    attn_w = e / jnp.sum(e, axis=-1, keepdims=True)

    # --- reassociated bmm: attn_applied @ wca == attn_w @ (enc @ wca); enc_wca is per-sequence.
    comb = comb_h + mm(attn_w, enc_wca_ref[...]) + bias_ref[2:3, 0:H]
    out = mm(jnp.maximum(comb, 0.0), w_fc_ref[...]) + bias_ref[3:4, 0:O]

    # --- carry hidden in VMEM; pack the three per-step results into one lane-dense output row.
    h_scr[...] = h_new
    out_ref[0, :, 0:O] = out
    out_ref[0, :, O:O + H] = h_new
    out_ref[0, :, O + H:O + H + L] = attn_w
    # (lanes beyond O+H+L are never read on the host)


def prepare_params(raw):
    """One-time packing of PyTorch-layout weights into the kernel layout (off the step path)."""
    H, L, O = raw["hid_dim"], raw["max_len"], raw["output_dim"]
    f32 = jnp.float32

    w_ih = jnp.asarray(raw["w_ih"], f32)   # (3H, H), gate order [r, z, n]
    w_hh = jnp.asarray(raw["w_hh"], f32)   # (3H, H)
    b_ih = jnp.asarray(raw["b_ih"], f32)
    b_hh = jnp.asarray(raw["b_hh"], f32)

    Z = jnp.zeros((H, H), f32)
    # Packed GRU weight: rows [x; h], columns [r | z | n_input | n_hidden]  -> (2H, 4H)
    w_gru = jnp.concatenate([
        jnp.concatenate([w_ih[0:H].T, w_ih[H:2 * H].T, w_ih[2 * H:3 * H].T, Z], axis=1),
        jnp.concatenate([w_hh[0:H].T, w_hh[H:2 * H].T, Z, w_hh[2 * H:3 * H].T], axis=1),
    ], axis=0)
    b_gru = jnp.concatenate([
        b_ih[0:H] + b_hh[0:H],            # r
        b_ih[H:2 * H] + b_hh[H:2 * H],    # z
        b_ih[2 * H:3 * H],                # n (input side)
        b_hh[2 * H:3 * H],                # n (hidden side, stays inside r*(.))
    ])                                    # (4H,)

    w_attn = jnp.asarray(raw["w_attn"], f32)               # (L, 2H)
    w_attn_sum = w_attn[:, :H].T + w_attn[:, H:].T         # (H, L): output == hidden == h_new
    w_comb = jnp.asarray(raw["w_comb"], f32)               # (H, 2H)
    wco = w_comb[:, :H].T                                  # acts on output (= h_new)
    wca = w_comb[:, H:].T                                  # acts on attn_applied (folded into enc)

    # Lane-aligned h_new-consumer matmul: logits cols in lanes [0,128), wco in [128,128+H).
    # (v5e note: width >128 costs an extra MXU pass there; drop the padding on v5e if it matters.)
    tw = LANE + _round_up(H, LANE)
    w_hnew = jnp.zeros((H, tw), f32)
    w_hnew = w_hnew.at[:, 0:L].set(w_attn_sum)
    w_hnew = w_hnew.at[:, LANE:LANE + H].set(wco)

    bw = _round_up(max(4 * H, L, H, O), LANE)
    bias = jnp.zeros((4, bw), f32)
    bias = bias.at[0, 0:4 * H].set(b_gru)
    bias = bias.at[1, 0:L].set(jnp.asarray(raw["b_attn"], f32))
    bias = bias.at[2, 0:H].set(jnp.asarray(raw["b_comb"], f32))
    bias = bias.at[3, 0:O].set(jnp.asarray(raw["b_fc"], f32))

    return {
        "emb": jnp.asarray(raw["embedding"], f32).reshape(O, 1, H),  # 3D for the row-gather spec
        "w_gru": w_gru,                                              # (2H, 4H)
        "w_hnew": w_hnew,                                            # (H, 128 + Hp)
        "wca": wca,                                                  # folded once per sequence
        "w_fc": jnp.asarray(raw["w_fc"], f32).T,                     # (H, O)
        "bias": bias,                                                # (4, BW)
    }


@jax.jit
def attn_decoder_decode(prep, tokens, hidden, encoder_outputs):
    """Run N decode steps (given token sequence) inside ONE pallas_call.

    Step i is exactly the PyTorch AttnDecoder.forward(tokens[i], h_i, encoder_outputs) with the
    hidden state carried in VMEM across grid steps.
    Returns (outputs (N,1,1,1,O), hiddens (N,1,1,H), attn_weights (N,1,1,L)).
    """
    O = prep["w_fc"].shape[-1]
    H = prep["w_gru"].shape[0] // 2
    L = encoder_outputs.shape[1]
    N = tokens.shape[0]
    slab_w = _round_up(max(O + H + L, LANE), LANE)

    tokens = tokens.reshape(N).astype(jnp.int32)
    h0 = hidden.reshape(1, H).astype(jnp.float32)
    # Step-invariant: fold the attn_combine "attn_applied" half into the encoder outputs once per
    # sequence, so the per-step bmm lands directly in the H-wide combine space (4 serial matmuls).
    enc_wca = jnp.dot(encoder_outputs.reshape(L, H).astype(jnp.float32), prep["wca"],
                      preferred_element_type=jnp.float32,
                      precision=jax.lax.Precision.HIGHEST)           # (L, H)

    const2d = lambda i, tok: (0, 0)     # weights: constant block index -> DMA'd once, resident
    slab = pl.pallas_call(
        attn_decoder_kernel,
        out_shape=jax.ShapeDtypeStruct((N, 1, slab_w), jnp.float32),
        grid_spec=pltpu.PrefetchScalarGridSpec(
            num_scalar_prefetch=1,                                    # tokens -> SMEM
            grid=(N,),
            in_specs=[
                pl.BlockSpec((1, 1, H), lambda i, tok: (tok[i], 0, 0)),  # embedding row gather
                pl.BlockSpec((1, H), const2d),                           # h0
                pl.BlockSpec(prep["w_gru"].shape, const2d),
                pl.BlockSpec(prep["w_hnew"].shape, const2d),
                pl.BlockSpec((L, H), const2d),                           # enc_wca
                pl.BlockSpec(prep["w_fc"].shape, const2d),
                pl.BlockSpec(prep["bias"].shape, const2d),
            ],
            out_specs=pl.BlockSpec((1, 1, slab_w), lambda i, tok: (i, 0, 0)),
            scratch_shapes=[pltpu.VMEM((1, H), jnp.float32)],            # hidden carry
        ),
        compiler_params=pltpu.CompilerParams(dimension_semantics=("arbitrary",)),
    )(tokens, prep["emb"], h0, prep["w_gru"], prep["w_hnew"], enc_wca,
      prep["w_fc"], prep["bias"])

    slab = slab[:, 0]                                                 # (N, slab_w)
    outs = slab[:, 0:O].reshape(N, 1, 1, 1, O)                        # fc_out  -> (B,1,T,O)
    hiddens = slab[:, O:O + H].reshape(N, 1, 1, H)                    # hidden  -> (n_layers,B,H)
    attn_ws = slab[:, O + H:O + H + L].reshape(N, 1, 1, L)            # weights -> (B,T,max_len)
    return outs, hiddens, attn_ws


def attn_decoder_forward(prep, token, hidden, encoder_outputs):
    """Single-step wrapper with the exact PyTorch return shapes (N=1 decode)."""
    outs, hiddens, attn_ws = attn_decoder_decode(prep, token.reshape(1), hidden, encoder_outputs)
    return outs[0], hiddens[0], attn_ws[0]


def reference_step(params, token, hidden, encoder_outputs):
    """Pure-JAX replica of the PyTorch forward (PyTorch weight conventions, eval mode)."""
    H = params["hid_dim"]
    emb = params["embedding"][token.reshape(())]
    xi = emb.reshape(1, H)
    hp = hidden.reshape(1, H)
    gi = xi @ params["w_ih"].T + params["b_ih"]
    gh = hp @ params["w_hh"].T + params["b_hh"]
    r = jax.nn.sigmoid(gi[:, :H] + gh[:, :H])
    z = jax.nn.sigmoid(gi[:, H:2 * H] + gh[:, H:2 * H])
    n = jnp.tanh(gi[:, 2 * H:] + r * gh[:, 2 * H:])
    hn = (1.0 - z) * n + z * hp
    output = hn.reshape(1, 1, H)
    hidden_new = hn.reshape(1, 1, H)
    cat1 = jnp.concatenate([output, hidden_new], axis=2)
    attn_w = jax.nn.softmax(cat1 @ params["w_attn"].T + params["b_attn"], axis=2)
    attn_applied = jnp.einsum("btl,blh->bth", attn_w, encoder_outputs)
    cat2 = jnp.concatenate([output, attn_applied], axis=2)
    comb = (cat2 @ params["w_comb"].T + params["b_comb"])[:, None]    # unsqueeze(1)
    out = jax.nn.relu(comb) @ params["w_fc"].T + params["b_fc"]
    return out, hidden_new, attn_w


if __name__ == "__main__":
    H, O, L, N = 32, 16, 10, 6          # hid_dim, output_dim (vocab), max_len, decode steps
    key = jax.random.PRNGKey(0)
    ks = jax.random.split(key, 14)
    s = 1.0 / jnp.sqrt(H)
    raw = {
        "hid_dim": H, "output_dim": O, "max_len": L,
        "embedding": jax.random.normal(ks[0], (O, H), jnp.float32),
        "w_ih": jax.random.uniform(ks[1], (3 * H, H), jnp.float32, -s, s),
        "w_hh": jax.random.uniform(ks[2], (3 * H, H), jnp.float32, -s, s),
        "b_ih": jax.random.uniform(ks[3], (3 * H,), jnp.float32, -s, s),
        "b_hh": jax.random.uniform(ks[4], (3 * H,), jnp.float32, -s, s),
        "w_attn": jax.random.uniform(ks[5], (L, 2 * H), jnp.float32, -s, s),
        "b_attn": jax.random.uniform(ks[6], (L,), jnp.float32, -s, s),
        "w_comb": jax.random.uniform(ks[7], (H, 2 * H), jnp.float32, -s, s),
        "b_comb": jax.random.uniform(ks[8], (H,), jnp.float32, -s, s),
        "w_fc": jax.random.uniform(ks[9], (O, H), jnp.float32, -s, s),
        "b_fc": jax.random.uniform(ks[10], (O,), jnp.float32, -s, s),
    }

    prep = prepare_params(raw)          # one-time weight packing, off the decode path

    tokens = jax.random.randint(ks[11], (N,), 0, O, dtype=jnp.int32)
    hidden = jax.random.normal(ks[12], (1, 1, H), jnp.float32)           # (n_layers=1, B=1, H)
    enc = jax.random.normal(ks[13], (1, L, H), jnp.float32)              # (B=1, max_len, H)

    # Folded N-step decode: one pallas_call for the whole sequence.
    outs, hiddens, attn_ws = attn_decoder_decode(prep, tokens, hidden, enc)
    jax.block_until_ready((outs, hiddens, attn_ws))
    assert outs.shape == (N, 1, 1, 1, O)
    assert hiddens.shape == (N, 1, 1, H)
    assert attn_ws.shape == (N, 1, 1, L)

    # Reference: step-by-step PyTorch-equivalent forward with its own carried hidden.
    # Remaining kernel/reference differences are matmul fusion / reassociation rounding
    # (the approx-reciprocal softmax was removed), which compounds slightly over the chain.
    with jax.default_matmul_precision("highest"):
        h_ref = hidden
        for i in range(N):
            r_out, r_h, r_w = reference_step(raw, tokens[i], h_ref, enc)
            assert jnp.allclose(hiddens[i], r_h, atol=1e-4, rtol=1e-4), ("hidden", i)
            assert jnp.allclose(attn_ws[i], r_w, atol=1e-4, rtol=1e-4), ("attn_w", i)
            assert jnp.allclose(outs[i], r_out, atol=1e-4, rtol=1e-4), ("out", i)
            h_ref = r_h

        # Single-step wrapper (exact PyTorch shapes) with tight single-step tolerances.
        tok1 = jnp.array([[3]], dtype=jnp.int32)
        o1, h1, w1 = attn_decoder_forward(prep, tok1, hidden, enc)
        jax.block_until_ready((o1, h1, w1))
        r_o1, r_h1, r_w1 = reference_step(raw, tok1, hidden, enc)
        assert o1.shape == (1, 1, 1, O) and h1.shape == (1, 1, H) and w1.shape == (1, 1, L)
        assert jnp.allclose(h1, r_h1, atol=1e-5, rtol=1e-5)
        assert jnp.allclose(w1, r_w1, atol=5e-5, rtol=1e-5)
        assert jnp.allclose(o1, r_o1, atol=5e-5, rtol=1e-5)

    # TODO(synk): training-mode stochastic dropout intentionally omitted (eval semantics).
    print("KERNEL_OK")
</pallas_src>

<mosaic_0001>
module attributes {stable_mosaic.version = 11 : i64} {
  func.func @attn_decoder_kernel(%arg0: i32, %arg1: memref<6xi32, #tpu.memory_space<smem>>, %arg2: memref<1x1x32xf32, #tpu.memory_space<vmem>>, %arg3: memref<1x32xf32, #tpu.memory_space<vmem>>, %arg4: memref<64x128xf32, #tpu.memory_space<vmem>>, %arg5: memref<32x256xf32, #tpu.memory_space<vmem>>, %arg6: memref<10x32xf32, #tpu.memory_space<vmem>>, %arg7: memref<32x16xf32, #tpu.memory_space<vmem>>, %arg8: memref<4x128xf32, #tpu.memory_space<vmem>>, %arg9: memref<1x1x128xf32, #tpu.memory_space<vmem>>, %arg10: memref<1x32xf32, #tpu.memory_space<vmem>>) attributes {dimension_semantics = [#tpu.dimension_semantics<arbitrary>], iteration_bounds = array<i64: 6>, scalar_prefetch = 1 : i64, scratch_operands = 1 : i64, tpu.core_type = #tpu.core_type<tc>, window_params = [{transform_indices = @transform_0, window_bounds = array<i64: 1, 1, 32>}, {pipeline_mode = #tpu.pipeline_mode<synchronous>, transform_indices = @transform_1, window_bounds = array<i64: 1, 32>}, {pipeline_mode = #tpu.pipeline_mode<synchronous>, transform_indices = @transform_2, window_bounds = array<i64: 64, 128>}, {pipeline_mode = #tpu.pipeline_mode<synchronous>, transform_indices = @transform_3, window_bounds = array<i64: 32, 256>}, {pipeline_mode = #tpu.pipeline_mode<synchronous>, transform_indices = @transform_4, window_bounds = array<i64: 10, 32>}, {pipeline_mode = #tpu.pipeline_mode<synchronous>, transform_indices = @transform_5, window_bounds = array<i64: 32, 16>}, {pipeline_mode = #tpu.pipeline_mode<synchronous>, transform_indices = @transform_6, window_bounds = array<i64: 4, 128>}, {transform_indices = @transform_7, window_bounds = array<i64: 1, 1, 128>}]} {
    %c0_i32 = arith.constant 0 : i32
    %0 = arith.cmpi eq, %arg0, %c0_i32 : i32
    %1 = arith.extui %0 : i1 to i32
    %c0_i32_0 = arith.constant 0 : i32
    %2 = arith.cmpi ne, %1, %c0_i32_0 : i32
    scf.if %2 {
      %c0_38 = arith.constant 0 : index
      %c0_39 = arith.constant 0 : index
      %71 = vector.load %arg3[%c0_38, %c0_39] : memref<1x32xf32, #tpu.memory_space<vmem>>, vector<1x32xf32>
      %c0_40 = arith.constant 0 : index
      %c0_41 = arith.constant 0 : index
      %72 = vector.load %arg10[%c0_40, %c0_41] : memref<1x32xf32, #tpu.memory_space<vmem>>, vector<1x32xf32>
      tpu.vector_store %arg10[%c0_40, %c0_41], %71 {strides = array<i32>} : memref<1x32xf32, #tpu.memory_space<vmem>>, vector<1x32xf32>,
    } else {
    }
    %c0 = arith.constant 0 : index
    %c0_1 = arith.constant 0 : index
    %c0_2 = arith.constant 0 : index
    %3 = vector.load %arg2[%c0, %c0_1, %c0_2] : memref<1x1x32xf32, #tpu.memory_space<vmem>>, vector<1x1x32xf32>
    %4 = vector.shape_cast %3 : vector<1x1x32xf32> to vector<1x32xf32>
    %c0_3 = arith.constant 0 : index
    %c0_4 = arith.constant 0 : index
    %5 = vector.load %arg10[%c0_3, %c0_4] : memref<1x32xf32, #tpu.memory_space<vmem>>, vector<1x32xf32>
    %c0_5 = arith.constant 0 : index
    %c0_6 = arith.constant 0 : index
    %6 = vector.load %arg4[%c0_5, %c0_6] : memref<64x128xf32, #tpu.memory_space<vmem>>, vector<32x128xf32>
    %cst = arith.constant dense<0.000000e+00> : vector<1x128xf32>
    %7 = tpu.matmul %4, %6, %cst {dimension_numbers = #tpu.dot_dimension_numbers<[1], [0], [0], [1], [0, 0, 1, 1], [], []>} : vector<1x32xf32>, vector<32x128xf32>, vector<1x128xf32> -> vector<1x128xf32>
    %c32 = arith.constant 32 : index
    %c0_7 = arith.constant 0 : index
    %8 = vector.load %arg4[%c32, %c0_7] : memref<64x128xf32, #tpu.memory_space<vmem>>, vector<32x128xf32>
    %cst_8 = arith.constant dense<0.000000e+00> : vector<1x128xf32>
    %9 = tpu.matmul %5, %8, %cst_8 {dimension_numbers = #tpu.dot_dimension_numbers<[1], [0], [0], [1], [0, 0, 1, 1], [], []>} : vector<1x32xf32>, vector<32x128xf32>, vector<1x128xf32> -> vector<1x128xf32>
    %10 = arith.addf %7, %9 : vector<1x128xf32>
    %c0_9 = arith.constant 0 : index
    %c0_10 = arith.constant 0 : index
    %11 = vector.load %arg8[%c0_9, %c0_10] : memref<4x128xf32, #tpu.memory_space<vmem>>, vector<1x128xf32>
    %12 = arith.addf %10, %11 : vector<1x128xf32>
    %13 = vector.extract_strided_slice %12 {offsets = [0, 0], sizes = [1, 32], strides = [1, 1]} : vector<1x128xf32> to vector<1x32xf32>
    %14 = arith.negf %13 : vector<1x32xf32>
    %15 = math.exp %14 : vector<1x32xf32>
    %cst_11 = arith.constant 1.000000e+00 : f32
    %16 = vector.broadcast %cst_11 : f32 to vector<1x32xf32>
    %17 = arith.addf %16, %15 : vector<1x32xf32>
    %18 = arith.divf %16, %17 : vector<1x32xf32>
    %19 = vector.extract_strided_slice %12 {offsets = [0, 32], sizes = [1, 32], strides = [1, 1]} : vector<1x128xf32> to vector<1x32xf32>
    %20 = arith.negf %19 : vector<1x32xf32>
    %21 = math.exp %20 : vector<1x32xf32>
    %cst_12 = arith.constant 1.000000e+00 : f32
    %22 = vector.broadcast %cst_12 : f32 to vector<1x32xf32>
    %23 = arith.addf %22, %21 : vector<1x32xf32>
    %24 = arith.divf %22, %23 : vector<1x32xf32>
    %25 = vector.extract_strided_slice %12 {offsets = [0, 64], sizes = [1, 32], strides = [1, 1]} : vector<1x128xf32> to vector<1x32xf32>
    %26 = vector.extract_strided_slice %12 {offsets = [0, 96], sizes = [1, 32], strides = [1, 1]} : vector<1x128xf32> to vector<1x32xf32>
    %27 = arith.mulf %18, %26 : vector<1x32xf32>
    %28 = arith.addf %25, %27 : vector<1x32xf32>
    %29 = math.tanh %28 : vector<1x32xf32>
    %cst_13 = arith.constant 1.000000e+00 : f32
    %30 = vector.broadcast %cst_13 : f32 to vector<1x32xf32>
    %31 = arith.subf %30, %24 : vector<1x32xf32>
    %32 = arith.mulf %31, %29 : vector<1x32xf32>
    %33 = arith.mulf %24, %5 : vector<1x32xf32>
    %34 = arith.addf %32, %33 : vector<1x32xf32>
    %c0_14 = arith.constant 0 : index
    %c0_15 = arith.constant 0 : index
    %35 = vector.load %arg5[%c0_14, %c0_15] : memref<32x256xf32, #tpu.memory_space<vmem>>, vector<32x256xf32>
    %cst_16 = arith.constant dense<0.000000e+00> : vector<1x256xf32>
    %36 = tpu.matmul %34, %35, %cst_16 {dimension_numbers = #tpu.dot_dimension_numbers<[1], [0], [0], [1], [0, 0, 1, 1], [], []>} : vector<1x32xf32>, vector<32x256xf32>, vector<1x256xf32> -> vector<1x256xf32>
    %37 = vector.extract_strided_slice %36 {offsets = [0, 0], sizes = [1, 10], strides = [1, 1]} : vector<1x256xf32> to vector<1x10xf32>
    %c1 = arith.constant 1 : index
    %c0_17 = arith.constant 0 : index
    %38 = vector.load %arg8[%c1, %c0_17] : memref<4x128xf32, #tpu.memory_space<vmem>>, vector<1x10xf32>
    %39 = arith.addf %37, %38 : vector<1x10xf32>
    %40 = vector.extract_strided_slice %36 {offsets = [0, 128], sizes = [1, 32], strides = [1, 1]} : vector<1x256xf32> to vector<1x32xf32>
    %cst_18 = arith.constant dense<0xFF800000> : vector<1xf32>
    %41 = vector.multi_reduction <maximumf>, %39, %cst_18 [1] : vector<1x10xf32> to vector<1xf32>
    %42 = vector.shape_cast %41 : vector<1xf32> to vector<1x1xf32>
    %43 = vector.broadcast %42 : vector<1x1xf32> to vector<1x10xf32>
    %44 = arith.subf %39, %43 : vector<1x10xf32>
    %45 = math.exp %44 : vector<1x10xf32>
    %cst_19 = arith.constant dense<0.000000e+00> : vector<1xf32>
    %46 = vector.multi_reduction <add>, %45, %cst_19 [1] : vector<1x10xf32> to vector<1xf32>
    %47 = vector.shape_cast %46 : vector<1xf32> to vector<1x1xf32>
    %48 = vector.broadcast %47 : vector<1x1xf32> to vector<1x10xf32>
    %49 = arith.divf %45, %48 : vector<1x10xf32>
    %c0_20 = arith.constant 0 : index
    %c0_21 = arith.constant 0 : index
    %50 = vector.load %arg6[%c0_20, %c0_21] : memref<10x32xf32, #tpu.memory_space<vmem>>, vector<10x32xf32>
    %cst_22 = arith.constant dense<0.000000e+00> : vector<1x32xf32>
    %51 = tpu.matmul %49, %50, %cst_22 {dimension_numbers = #tpu.dot_dimension_numbers<[1], [0], [0], [1], [0, 0, 1, 1], [], []>} : vector<1x10xf32>, vector<10x32xf32>, vector<1x32xf32> -> vector<1x32xf32>
    %52 = arith.addf %40, %51 : vector<1x32xf32>
    %c2 = arith.constant 2 : index
    %c0_23 = arith.constant 0 : index
    %53 = vector.load %arg8[%c2, %c0_23] : memref<4x128xf32, #tpu.memory_space<vmem>>, vector<1x32xf32>
    %54 = arith.addf %52, %53 : vector<1x32xf32>
    %cst_24 = arith.constant 0.000000e+00 : f32
    %55 = vector.broadcast %cst_24 : f32 to vector<1x32xf32>
    %56 = arith.maximumf %54, %55 : vector<1x32xf32>
    %c0_25 = arith.constant 0 : index
    %c0_26 = arith.constant 0 : index
    %57 = vector.load %arg7[%c0_25, %c0_26] : memref<32x16xf32, #tpu.memory_space<vmem>>, vector<32x16xf32>
    %cst_27 = arith.constant dense<0.000000e+00> : vector<1x16xf32>
    %58 = tpu.matmul %56, %57, %cst_27 {dimension_numbers = #tpu.dot_dimension_numbers<[1], [0], [0], [1], [0, 0, 1, 1], [], []>} : vector<1x32xf32>, vector<32x16xf32>, vector<1x16xf32> -> vector<1x16xf32>
    %c3 = arith.constant 3 : index
    %c0_28 = arith.constant 0 : index
    %59 = vector.load %arg8[%c3, %c0_28] : memref<4x128xf32, #tpu.memory_space<vmem>>, vector<1x16xf32>
    %60 = arith.addf %58, %59 : vector<1x16xf32>
    %c0_29 = arith.constant 0 : index
    %c0_30 = arith.constant 0 : index
    %61 = vector.load %arg10[%c0_29, %c0_30] : memref<1x32xf32, #tpu.memory_space<vmem>>, vector<1x32xf32>
    tpu.vector_store %arg10[%c0_29, %c0_30], %34 {strides = array<i32>} : memref<1x32xf32, #tpu.memory_space<vmem>>, vector<1x32xf32>,
    %c0_31 = arith.constant 0 : index
    %c0_32 = arith.constant 0 : index
    %c0_33 = arith.constant 0 : index
    %62 = vector.load %arg9[%c0_31, %c0_32, %c0_33] : memref<1x1x128xf32, #tpu.memory_space<vmem>>, vector<1x1x16xf32>
    %63 = vector.shape_cast %62 : vector<1x1x16xf32> to vector<1x16xf32>
    %64 = vector.shape_cast %60 : vector<1x16xf32> to vector<1x1x16xf32>
    tpu.vector_store %arg9[%c0_31, %c0_32, %c0_33], %64 {strides = array<i32>} : memref<1x1x128xf32, #tpu.memory_space<vmem>>, vector<1x1x16xf32>,
    %c0_34 = arith.constant 0 : index
    %c0_35 = arith.constant 0 : index
    %c16 = arith.constant 16 : index
    %65 = vector.load %arg9[%c0_34, %c0_35, %c16] : memref<1x1x128xf32, #tpu.memory_space<vmem>>, vector<1x1x32xf32>
    %66 = vector.shape_cast %65 : vector<1x1x32xf32> to vector<1x32xf32>
    %67 = vector.shape_cast %34 : vector<1x32xf32> to vector<1x1x32xf32>
    tpu.vector_store %arg9[%c0_34, %c0_35, %c16], %67 {strides = array<i32>} : memref<1x1x128xf32, #tpu.memory_space<vmem>>, vector<1x1x32xf32>,
    %c0_36 = arith.constant 0 : index
    %c0_37 = arith.constant 0 : index
    %c48 = arith.constant 48 : index
    %68 = vector.load %arg9[%c0_36, %c0_37, %c48] : memref<1x1x128xf32, #tpu.memory_space<vmem>>, vector<1x1x10xf32>
    %69 = vector.shape_cast %68 : vector<1x1x10xf32> to vector<1x10xf32>
    %70 = vector.shape_cast %49 : vector<1x10xf32> to vector<1x1x10xf32>
    tpu.vector_store %arg9[%c0_36, %c0_37, %c48], %70 {strides = array<i32>} : memref<1x1x128xf32, #tpu.memory_space<vmem>>, vector<1x1x10xf32>,
    return
  }
  func.func @transform_0(%arg0: i32, %arg1: memref<6xi32, #tpu.memory_space<smem>>) -> (i32, i32, i32) {
    %0 = arith.index_cast %arg0 : i32 to index
    %1 = memref.load %arg1[%0] : memref<6xi32, #tpu.memory_space<smem>>
    %c0_i32 = arith.constant 0 : i32
    %c0_i32_0 = arith.constant 0 : i32
    %c0_i32_1 = arith.constant 0 : i32
    return %1, %c0_i32, %c0_i32_0 : i32, i32, i32
  }
  func.func @transform_1(%arg0: i32, %arg1: memref<6xi32, #tpu.memory_space<smem>>) -> (i32, i32) {
    %c0_i32 = arith.constant 0 : i32
    %c0_i32_0 = arith.constant 0 : i32
    %c0_i32_1 = arith.constant 0 : i32
    return %c0_i32, %c0_i32_0 : i32, i32
  }
  func.func @transform_2(%arg0: i32, %arg1: memref<6xi32, #tpu.memory_space<smem>>) -> (i32, i32) {
    %c0_i32 = arith.constant 0 : i32
    %c0_i32_0 = arith.constant 0 : i32
    %c0_i32_1 = arith.constant 0 : i32
    return %c0_i32, %c0_i32_0 : i32, i32
  }
  func.func @transform_3(%arg0: i32, %arg1: memref<6xi32, #tpu.memory_space<smem>>) -> (i32, i32) {
    %c0_i32 = arith.constant 0 : i32
    %c0_i32_0 = arith.constant 0 : i32
    %c0_i32_1 = arith.constant 0 : i32
    return %c0_i32, %c0_i32_0 : i32, i32
  }
  func.func @transform_4(%arg0: i32, %arg1: memref<6xi32, #tpu.memory_space<smem>>) -> (i32, i32) {
    %c0_i32 = arith.constant 0 : i32
    %c0_i32_0 = arith.constant 0 : i32
    %c0_i32_1 = arith.constant 0 : i32
    return %c0_i32, %c0_i32_0 : i32, i32
  }
  func.func @transform_5(%arg0: i32, %arg1: memref<6xi32, #tpu.memory_space<smem>>) -> (i32, i32) {
    %c0_i32 = arith.constant 0 : i32
    %c0_i32_0 = arith.constant 0 : i32
    %c0_i32_1 = arith.constant 0 : i32
    return %c0_i32, %c0_i32_0 : i32, i32
  }
  func.func @transform_6(%arg0: i32, %arg1: memref<6xi32, #tpu.memory_space<smem>>) -> (i32, i32) {
    %c0_i32 = arith.constant 0 : i32
    %c0_i32_0 = arith.constant 0 : i32
    %c0_i32_1 = arith.constant 0 : i32
    return %c0_i32, %c0_i32_0 : i32, i32
  }
  func.func @transform_7(%arg0: i32, %arg1: memref<6xi32, #tpu.memory_space<smem>>) -> (i32, i32, i32) {
    %c0_i32 = arith.constant 0 : i32
    %c0_i32_0 = arith.constant 0 : i32
    %c0_i32_1 = arith.constant 0 : i32
    return %arg0, %c0_i32, %c0_i32_0 : i32, i32, i32
  }
}

</mosaic_0001>

<llo_original>
// kernel: attn_decoder_decode.1
$region0: #{attn_decoder_decode.1}
  #allocation0 [shape = 'u32[]', space=smem, size = 0x4, offset = 0x4, fixed_abs, tag = 'smem constant byte address 0x4 - core index']
  #allocation1 [shape = 'u32[144,128]{1,0:T(1,128)}', space=vmem, size = 0x12000, scoped, tag = 'internal scratch']
  #allocation2 [shape = 'f32[1,32]{1,0:T(1,128)}', space=vmem, size = 0x200, scoped, tag = 'scratch operand']
  #allocation3 [shape = 's32[1]{0}', space=sflag, size = 0x4, scoped, tag = 'scoped memory for attn_decoder_decode.1']
  #allocation4 [shape = 'u8[512]{0}', space=smem, size = 0x200, scoped, tag = 'prefetched SMEM operand 0']
  %s0 = inlined_call_operand.hbm [shape: s32[6], index: 0, kind: input, shape index: {}]
  %s1 = inlined_call_operand.hbm [shape: f32[16,1,32], index: 1, kind: input, shape index: {}]
  %s2 = inlined_call_operand.vmem [shape: f32[1,32], index: 2, kind: input, shape index: {}]
  %s3 = inlined_call_operand.vmem [shape: f32[64,128], index: 3, kind: input, shape index: {}]
  %s4 = inlined_call_operand.vmem [shape: f32[32,256], index: 4, kind: input, shape index: {}]
  %s5 = inlined_call_operand.vmem [shape: f32[10,32], index: 5, kind: input, shape index: {}]
  %s6 = inlined_call_operand.vmem [shape: f32[32,16], index: 6, kind: input, shape index: {}]
  %s7 = inlined_call_operand.hbm [shape: f32[4,128], index: 7, kind: input, shape index: {}]
  %s8 = inlined_call_operand.vmem [shape: f32[6,1,128], index: 8, kind: output, shape index: {}]
  %s9 = sld [smem:[#allocation0]]
  $region73: #{attn_decoder_decode.1} parent=0
    _
  %s11 = ssub.s32 1, %s9
  %s12 = scalar_select 0, %s11, %s9
  %14 = dma.hbm_to_smem %s0, 16, [#allocation4], [#allocation3]
  %15 = dma.done [#allocation3], 16
  %16 = sfence
  $region1: #{attn_decoder_decode.1} parent=0
    #allocation5 [shape = 'u8[1024]{0}', space=vmem, size = 0x400, scoped, tag = 'input window, operand 1']
    #allocation6 [shape = 's32[2]{0}', space=sflag, size = 0x8, scoped, tag = 'scoped memory for attn_decoder_decode.1']
    #allocation7 [shape = 'u8[2048]{0}', space=vmem, size = 0x800, scoped, tag = 'input window, operand 7, single buffered']
    #allocation8 [shape = 's32[1]{0}', space=sflag, size = 0x4, scoped, tag = 'scoped memory for attn_decoder_decode.1']
    %17 = vsyncpa [#allocation6], 0
    %s18 = scalar_lea.sflag [#allocation6], 1
    %19 = vsyncpa %s18, 0
    %20 = vsyncpa [#allocation8], 0
    loop: start=0, step=1, limit=8
    $region2: #{attn_decoder_decode.1} parent=1 // loop_pre_header
      _
    $region3: #{attn_decoder_decode.1} parent=1 // loop_header
      %s22 = sphi 0, %s26
      %p23 = scmp.ge.s32.totalorder %s22, 8
      %s34 = sphi 0, %s36
      %s37 = sphi 0, %s34
      %s38 = sphi 0, %s37
      %s54 = sphi 0, %s38
      %s58 = sphi 0, %s58
      %s60 = sphi 0, %s58
      %s61 = sphi 0, %s60
      %s75 = sphi 0, %s61
      %s79 = sphi 0, %s79
      %s81 = sphi 0, %s79
      %s82 = sphi 0, %s81
      %s96 = sphi 0, %s82
      %s100 = sphi 0, %s100
      %s102 = sphi 0, %s100
      %s103 = sphi 0, %s102
      %s117 = sphi 0, %s103
      %s121 = sphi 0, %s121
      %s123 = sphi 0, %s121
      %s124 = sphi 0, %s123
      %s138 = sphi 0, %s124
      %s142 = sphi 0, %s142
      %s144 = sphi 0, %s142
      %s145 = sphi 0, %s144
      %s159 = sphi 0, %s145
      %s163 = sphi 0, %s163
      %s165 = sphi 0, %s163
      %s166 = sphi 0, %s165
      %s180 = sphi 0, %s166
      %s186 = sphi 0, %s188
      %s189 = sphi 0, %s186
      %s190 = sphi 0, %s189
      %s206 = sphi 0, %s190
    $region4: #{attn_decoder_decode.1} parent=1 // loop_header_branch
      %25 = sbr.rel (%p23) target = $region8
    $region5: #{attn_decoder_decode.1} parent=1 // loop_body
      %s27 = ssub.s32 %s22, 1
      %s28 = ssub.s32 %s22, 2
      %s29 = sadd.s32 %s22, 1
      %s30 = sld [smem:[#allocation4 + %s22]]
      %s31 = sld [smem:[#allocation4 + %s29]]
      %s32 = ssub.s32 %s30, %s31
      %p33 = scmp.eq.s32.totalorder %s32, 0
      %s35 = sadd.s32 %s34, 1
      %s36 = scalar_select %p33, %s34, %s35
      %p39 = pneg %p33
      %p40 = scmp.eq.s32.totalorder %s22, 5
      %p41 = por %p39, %p40
      %p42 = scmp.ne.s32.totalorder %s34, %s37
      %p43 = scmp.eq.s32.totalorder %s22, 0
      %p44 = por %p42, %p43
      %p45 = scmp.ne.s32.totalorder %s34, %s37
      %p46 = scmp.eq.s32.totalorder %s27, 5
      %p47 = por %p45, %p46
      %p48 = scmp.ne.s32.totalorder %s37, %s38
      %p49 = scmp.eq.s32.totalorder %s27, 0
      %p50 = por %p48, %p49
      %p51 = scmp.ne.s32.totalorder %s37, %s38
      %p52 = scmp.eq.s32.totalorder %s28, 5
      %p53 = por %p51, %p52
      %p55 = scmp.ne.s32.totalorder %s38, %s54
      %p56 = scmp.eq.s32.totalorder %s28, 0
      %p57 = por %p55, %p56
      %s59 = sadd.s32 %s58, 1
      %p62 = scmp.eq.s32.totalorder %s22, 5
      %p63 = scmp.ne.s32.totalorder %s58, %s60
      %p64 = scmp.eq.s32.totalorder %s22, 0
      %p65 = por %p63, %p64
      %p66 = scmp.ne.s32.totalorder %s58, %s60
      %p67 = scmp.eq.s32.totalorder %s27, 5
      %p68 = por %p66, %p67
      %p69 = scmp.ne.s32.totalorder %s60, %s61
      %p70 = scmp.eq.s32.totalorder %s27, 0
      %p71 = por %p69, %p70
      %p72 = scmp.ne.s32.totalorder %s60, %s61
      %p73 = scmp.eq.s32.totalorder %s28, 5
      %p74 = por %p72, %p73
      %p76 = scmp.ne.s32.totalorder %s61, %s75
      %p77 = scmp.eq.s32.totalorder %s28, 0
      %p78 = por %p76, %p77
      %s80 = sadd.s32 %s79, 1
      %p83 = scmp.eq.s32.totalorder %s22, 5
      %p84 = scmp.ne.s32.totalorder %s79, %s81
      %p85 = scmp.eq.s32.totalorder %s22, 0
      %p86 = por %p84, %p85
      %p87 = scmp.ne.s32.totalorder %s79, %s81
      %p88 = scmp.eq.s32.totalorder %s27, 5
      %p89 = por %p87, %p88
      %p90 = scmp.ne.s32.totalorder %s81, %s82
      %p91 = scmp.eq.s32.totalorder %s27, 0
      %p92 = por %p90, %p91
      %p93 = scmp.ne.s32.totalorder %s81, %s82
      %p94 = scmp.eq.s32.totalorder %s28, 5
      %p95 = por %p93, %p94
      %p97 = scmp.ne.s32.totalorder %s82, %s96
      %p98 = scmp.eq.s32.totalorder %s28, 0
      %p99 = por %p97, %p98
      %s101 = sadd.s32 %s100, 1
      %p104 = scmp.eq.s32.totalorder %s22, 5
      %p105 = scmp.ne.s32.totalorder %s100, %s102
      %p106 = scmp.eq.s32.totalorder %s22, 0
      %p107 = por %p105, %p106
      %p108 = scmp.ne.s32.totalorder %s100, %s102
      %p109 = scmp.eq.s32.totalorder %s27, 5
      %p110 = por %p108, %p109
      %p111 = scmp.ne.s32.totalorder %s102, %s103
      %p112 = scmp.eq.s32.totalorder %s27, 0
      %p113 = por %p111, %p112
      %p114 = scmp.ne.s32.totalorder %s102, %s103
      %p115 = scmp.eq.s32.totalorder %s28, 5
      %p116 = por %p114, %p115
      %p118 = scmp.ne.s32.totalorder %s103, %s117
      %p119 = scmp.eq.s32.totalorder %s28, 0
      %p120 = por %p118, %p119
      %s122 = sadd.s32 %s121, 1
      %p125 = scmp.eq.s32.totalorder %s22, 5
      %p126 = scmp.ne.s32.totalorder %s121, %s123
      %p127 = scmp.eq.s32.totalorder %s22, 0
      %p128 = por %p126, %p127
      %p129 = scmp.ne.s32.totalorder %s121, %s123
      %p130 = scmp.eq.s32.totalorder %s27, 5
      %p131 = por %p129, %p130
      %p132 = scmp.ne.s32.totalorder %s123, %s124
      %p133 = scmp.eq.s32.totalorder %s27, 0
      %p134 = por %p132, %p133
      %p135 = scmp.ne.s32.totalorder %s123, %s124
      %p136 = scmp.eq.s32.totalorder %s28, 5
      %p137 = por %p135, %p136
      %p139 = scmp.ne.s32.totalorder %s124, %s138
      %p140 = scmp.eq.s32.totalorder %s28, 0
      %p141 = por %p139, %p140
      %s143 = sadd.s32 %s142, 1
      %p146 = scmp.eq.s32.totalorder %s22, 5
      %p147 = scmp.ne.s32.totalorder %s142, %s144
      %p148 = scmp.eq.s32.totalorder %s22, 0
      %p149 = por %p147, %p148
      %p150 = scmp.ne.s32.totalorder %s142, %s144
      %p151 = scmp.eq.s32.totalorder %s27, 5
      %p152 = por %p150, %p151
      %p153 = scmp.ne.s32.totalorder %s144, %s145
      %p154 = scmp.eq.s32.totalorder %s27, 0
      %p155 = por %p153, %p154
      %p156 = scmp.ne.s32.totalorder %s144, %s145
      %p157 = scmp.eq.s32.totalorder %s28, 5
      %p158 = por %p156, %p157
      %p160 = scmp.ne.s32.totalorder %s145, %s159
      %p161 = scmp.eq.s32.totalorder %s28, 0
      %p162 = por %p160, %p161
      %s164 = sadd.s32 %s163, 1
      %p167 = scmp.eq.s32.totalorder %s22, 5
      %p168 = scmp.ne.s32.totalorder %s163, %s165
      %p169 = scmp.eq.s32.totalorder %s22, 0
      %p170 = por %p168, %p169
      %p171 = scmp.ne.s32.totalorder %s163, %s165
      %p172 = scmp.eq.s32.totalorder %s27, 5
      %p173 = por %p171, %p172
      %p174 = scmp.ne.s32.totalorder %s165, %s166
      %p175 = scmp.eq.s32.totalorder %s27, 0
      %p176 = por %p174, %p175
      %p177 = scmp.ne.s32.totalorder %s165, %s166
      %p178 = scmp.eq.s32.totalorder %s28, 5
      %p179 = por %p177, %p178
      %p181 = scmp.ne.s32.totalorder %s166, %s180
      %p182 = scmp.eq.s32.totalorder %s28, 0
      %p183 = por %p181, %p182
      %s184 = ssub.s32 %s22, %s29
      %p185 = scmp.eq.s32.totalorder %s184, 0
      %s187 = sadd.s32 %s186, 1
      %s188 = scalar_select %p185, %s186, %s187
      %p191 = pneg %p185
      %p192 = scmp.eq.s32.totalorder %s22, 5
      %p193 = por %p191, %p192
      %p194 = scmp.ne.s32.totalorder %s186, %s189
      %p195 = scmp.eq.s32.totalorder %s22, 0
      %p196 = por %p194, %p195
      %p197 = scmp.ne.s32.totalorder %s186, %s189
      %p198 = scmp.eq.s32.totalorder %s27, 5
      %p199 = por %p197, %p198
      %p200 = scmp.ne.s32.totalorder %s189, %s190
      %p201 = scmp.eq.s32.totalorder %s27, 0
      %p202 = por %p200, %p201
      %p203 = scmp.ne.s32.totalorder %s189, %s190
      %p204 = scmp.eq.s32.totalorder %s28, 5
      %p205 = por %p203, %p204
      %p207 = scmp.ne.s32.totalorder %s190, %s206
      %p208 = scmp.eq.s32.totalorder %s28, 0
      %p209 = por %p207, %p208
      %p210 = scmp.le.s32.totalorder 1, %s22
      %p211 = scmp.lt.s32.totalorder %s22, 7
      %p212 = pnand %p210, %p211
      %p213 = pneg %p212
      // Predicated region
      $region9: #{attn_decoder_decode.1} parent=5 // pred_check
        _
      $region10: #{attn_decoder_decode.1} parent=5 // pred_check_branch
        %215 = sbr.rel (%p212) target = $region12
      $region11: #{attn_decoder_decode.1} parent=5 // pred_region
        %s216 = ssub.s32 %s22, 1
        // Predicated region
        $region13: #{attn_decoder_decode.1} parent=11 // pred_check
          %p217 = pneg %p71
        $region14: #{attn_decoder_decode.1} parent=11 // pred_check_branch
          %219 = sbr.rel (%p217) target = $region16
        $region15: #{attn_decoder_decode.1} parent=11 // pred_region
          _
        $region16: #{attn_decoder_decode.1} parent=11 // pred_fallthru
          _
        // Predicated region
        $region17: #{attn_decoder_decode.1} parent=11 // pred_check
          %p220 = pneg %p92
        $region18: #{attn_decoder_decode.1} parent=11 // pred_check_branch
          %222 = sbr.rel (%p220) target = $region20
        $region19: #{attn_decoder_decode.1} parent=11 // pred_region
          _
        $region20: #{attn_decoder_decode.1} parent=11 // pred_fallthru
          _
        // Predicated region
        $region21: #{attn_decoder_decode.1} parent=11 // pred_check
          %p223 = pneg %p113
        $region22: #{attn_decoder_decode.1} parent=11 // pred_check_branch
          %225 = sbr.rel (%p223) target = $region24
        $region23: #{attn_decoder_decode.1} parent=11 // pred_region
          _
        $region24: #{attn_decoder_decode.1} parent=11 // pred_fallthru
          _
        // Predicated region
        $region25: #{attn_decoder_decode.1} parent=11 // pred_check
          %p226 = pneg %p134
        $region26: #{attn_decoder_decode.1} parent=11 // pred_check_branch
          %228 = sbr.rel (%p226) target = $region28
        $region27: #{attn_decoder_decode.1} parent=11 // pred_region
          _
        $region28: #{attn_decoder_decode.1} parent=11 // pred_fallthru
          _
        // Predicated region
        $region29: #{attn_decoder_decode.1} parent=11 // pred_check
          %p229 = pneg %p155
        $region30: #{attn_decoder_decode.1} parent=11 // pred_check_branch
          %231 = sbr.rel (%p229) target = $region32
        $region31: #{attn_decoder_decode.1} parent=11 // pred_region
          _
        $region32: #{attn_decoder_decode.1} parent=11 // pred_fallthru
          _
        // Predicated region
        $region33: #{attn_decoder_decode.1} parent=11 // pred_check
          %p232 = pneg %p176
        $region34: #{attn_decoder_decode.1} parent=11 // pred_check_branch
          %234 = sbr.rel (%p232) target = $region36
        $region35: #{attn_decoder_decode.1} parent=11 // pred_region
          %s236 = ssub.s32 64, 64
          %237 = vsyncadd [#allocation8], %s236
          %s239 = sshll.u32 [#allocation7], 4
          %s240 = int_to_ptr.vmem [resolvable:$true] %s239
          %242 = dma.hbm_to_vmem [thread:$0]  %s7, 64, %s240, [#allocation8]
        $region36: #{attn_decoder_decode.1} parent=11 // pred_fallthru
          _
      $region12: #{attn_decoder_decode.1} parent=5 // pred_fallthru
        _
      %p243 = scmp.lt.s32.totalorder %s22, 6
      // Predicated region
      $region37: #{attn_decoder_decode.1} parent=5 // pred_check
        %p244 = pneg %p243
      $region38: #{attn_decoder_decode.1} parent=5 // pred_check_branch
        %246 = sbr.rel (%p244) target = $region40
      $region39: #{attn_decoder_decode.1} parent=5 // pred_region
        // Predicated region
        $region41: #{attn_decoder_decode.1} parent=39 // pred_check
          %p247 = pneg %p44
        $region42: #{attn_decoder_decode.1} parent=39 // pred_check_branch
          %249 = sbr.rel (%p247) target = $region44
        $region43: #{attn_decoder_decode.1} parent=39 // pred_region
          %s250 = sand.u32 %s34, 1
          %s251 = scalar_lea.sflag [#allocation6], %s250
          %s252 = sand.u32 %s34, 1
          %s253 = scalar_lea.vmem [#allocation5], %s252
          %s254 = sld [smem:[#allocation4 + %s22]]
          %s256 = ssub.s32 16, 16
          %257 = vsyncadd %s251, %s256
          %s258 = smul.addr %s254, 16
          %s259 = scalar_lea.hbm %s1, %s258
          %s261 = sshll.u32 %s253, 4
          %s262 = int_to_ptr.vmem [resolvable:$true] %s261
          %264 = dma.hbm_to_vmem [thread:$0]  %s259, 16, %s262, %s251
        $region44: #{attn_decoder_decode.1} parent=39 // pred_fallthru
          _
      $region40: #{attn_decoder_decode.1} parent=5 // pred_fallthru
        _
      %p265 = scmp.le.s32.totalorder 1, %s22
      %p266 = scmp.lt.s32.totalorder %s22, 7
      %p267 = pnand %p265, %p266
      %p268 = pneg %p267
      // Predicated region
      $region45: #{attn_decoder_decode.1} parent=5 // pred_check
        _
      $region46: #{attn_decoder_decode.1} parent=5 // pred_check_branch
        %270 = sbr.rel (%p267) target = $region48
      $region47: #{attn_decoder_decode.1} parent=5 // pred_region
        %s271 = ssub.s32 %s22, 1
        %s272 = sand.u32 %s37, 1
        %s273 = scalar_lea.sflag [#allocation6], %s272
        %s274 = sand.u32 %s37, 1
        %s275 = scalar_lea.vmem [#allocation5], %s274
        // Predicated region
        $region49: #{attn_decoder_decode.1} parent=47 // pred_check
          %p276 = pneg %p50
        $region50: #{attn_decoder_decode.1} parent=47 // pred_check_branch
          %278 = sbr.rel (%p276) target = $region52
        $region51: #{attn_decoder_decode.1} parent=47 // pred_region
          %279 = dma.done %s273, 16
        $region52: #{attn_decoder_decode.1} parent=47 // pred_fallthru
          _
        // Predicated region
        $region53: #{attn_decoder_decode.1} parent=47 // pred_check
          %p280 = pneg %p176
        $region54: #{attn_decoder_decode.1} parent=47 // pred_check_branch
          %282 = sbr.rel (%p280) target = $region56
        $region55: #{attn_decoder_decode.1} parent=47 // pred_region
          %283 = dma.done [#allocation8], 64
        $region56: #{attn_decoder_decode.1} parent=47 // pred_fallthru
          _
        %s284 = sand.u32 %s37, 1
        %s285 = scalar_lea.sflag [#allocation6], %s284
        %s286 = sand.u32 %s37, 1
        %s287 = scalar_lea.vmem [#allocation5], %s286
        %p288 = pneg %p50
        %p289 = pneg %p47
        %p290 = pneg %p71
        %p291 = pneg %p68
        %p292 = pneg %p92
        %p293 = pneg %p89
        %p294 = pneg %p113
        %p295 = pneg %p110
        %p296 = pneg %p134
        %p297 = pneg %p131
        %p298 = pneg %p155
        %p299 = pneg %p152
        %p300 = pneg %p176
        %p301 = pneg %p173
        %p302 = pneg %p202
        %p303 = pneg %p199
        %p304 = scmp.lt.s32.totalorder %s27, 5
        %s305 = scalar_select %p304, %s27, 5
        %s306 = scalar_lea.vmem %s8, %s305
        %s307 = sld [smem:[#allocation4 + %s27]]
        %p308 = scmp.lt.s32.totalorder %s27, 5
        %s309 = scalar_select %p308, %s27, 5
        %s310 = scalar_lea.vmem %s8, %s309
        %p311 = scmp.eq.s32.totalorder %s27, 0
        // Predicated region
        $region57: #{attn_decoder_decode.1} parent=47 // pred_check
          %p312 = pneg %p311
        $region58: #{attn_decoder_decode.1} parent=47 // pred_check_branch
          %314 = sbr.rel (%p312) target = $region60
        $region59: #{attn_decoder_decode.1} parent=47 // pred_region
          %v315 = vld [vmem:[%s2] sm:$0x1]
          %vm316 = vcmask 253952
          %317 = vst.msk [vmem:[#allocation2] sm:$0x1] %vm316, %v315
        $region60: #{attn_decoder_decode.1} parent=47 // pred_fallthru
          _
        %v318 = vld [vmem:[%s275] sm:$0x1]
        %v319 = vld [vmem:[#allocation2] sm:$0x1]
        %v320 = vld [vmem:[%s3] sm:$0xff]
        %v321 = vld [vmem:[%s3 + $0x8] sm:$0xff]
        %v322 = vld [vmem:[%s3 + $0x10] sm:$0xff]
        %v323 = vld [vmem:[%s3 + $0x18] sm:$0xff]
        %v324 = vld [vmem:[%s3 + $0x20] sm:$0xff]
        %v325 = vld [vmem:[%s3 + $0x28] sm:$0xff]
        %v326 = vld [vmem:[%s3 + $0x30] sm:$0xff]
        %v327 = vld [vmem:[%s3 + $0x38] sm:$0xff]
        %vm328 = vcmask 261120
        %v330 = vsel %vm328, %v319, 0
        %332 = vmatprep.subr.mxu0 0.0
        %333 = vmatpush1.msra.mxu0 %v324
        %334 = vmatprep.subr.mxu0 0.0
        %335 = vmatpush1.msra.mxu0 %v325
        %336 = vmatprep.subr.mxu0 0.0
        %337 = vmatpush1.msra.mxu0 %v326
        %338 = vmatprep.subr.mxu0 0.0
        %339 = vmatpush1.msra.mxu0 %v327
        %340 = vmatprep.subr.mxu0 0.0
        %341 = vmatpush1.msra.mxu0 0.0
        %342 = vmatprep.subr.mxu0 0.0
        %343 = vmatpush1.msra.mxu0 0.0
        %344 = vmatprep.subr.mxu0 0.0
        %345 = vmatpush1.msra.mxu0 0.0
        %346 = vmatprep.subr.mxu0 0.0
        %347 = vmatpush1.msra.mxu0 0.0
        %348 = vmatprep.subr.mxu0 0.0
        %349 = vmatpush1.msra.mxu0 0.0
        %350 = vmatprep.subr.mxu0 0.0
        %351 = vmatpush1.msra.mxu0 0.0
        %352 = vmatprep.subr.mxu0 0.0
        %353 = vmatpush1.msra.mxu0 0.0
        %354 = vmatprep.subr.mxu0 0.0
        %355 = vmatpush1.msra.mxu0 0.0
        %356 = vmatprep.subr.mxu0 0.0
        %357 = vmatpush1.msra.mxu0 0.0
        %358 = vmatprep.subr.mxu0 0.0
        %359 = vmatpush1.msra.mxu0 0.0
        %360 = vmatprep.subr.mxu0 0.0
        %361 = vmatpush1.msra.mxu0 0.0
        %362 = vmatprep.subr.mxu0 0.0
        %363 = vmatpush1.msra.mxu0 0.0
        %364 = vmatprep.subr.mxu0 0.0
        %365 = vmatpush1.msra.mxu0 0.0
        %366 = vmatprep.subr.mxu0 0.0
        %367 = vmatpush1.msra.mxu0 0.0
        %368 = vmatprep.subr.mxu0 0.0
        %369 = vmatpush1.msra.mxu0 0.0
        %370 = vmatprep.subr.mxu0 0.0
        %371 = vmatpush1.msra.mxu0 0.0
        %372 = vmatprep.subr.mxu0 0.0
        %373 = vmatpush1.msra.mxu0 0.0
        %374 = vmatprep.subr.mxu0 0.0
        %375 = vmatpush1.msra.mxu0 0.0
        %376 = vmatprep.subr.mxu0 0.0
        %377 = vmatpush1.msra.mxu0 0.0
        %378 = vmatprep.subr.mxu0 0.0
        %379 = vmatpush1.msra.mxu0 0.0
        %380 = vmatprep.subr.mxu0 0.0
        %381 = vmatpush1.msra.mxu0 0.0
        %382 = vmatprep.subr.mxu0 0.0
        %383 = vmatpush1.msra.mxu0 0.0
        %384 = vmatprep.subr.mxu0 0.0
        %385 = vmatpush1.msra.mxu0 0.0
        %386 = vmatprep.subr.mxu0 0.0
        %387 = vmatpush1.msra.mxu0 0.0
        %388 = vmatprep.subr.mxu0 0.0
        %389 = vmatpush1.msra.mxu0 0.0
        %390 = vmatprep.subr.mxu0 0.0
        %391 = vmatpush1.msra.mxu0 0.0
        %392 = vmatprep.subr.mxu0 0.0
        %393 = vmatpush1.msra.mxu0 0.0
        %394 = vmatprep.subr.mxu0 0.0
        %395 = vmatpush1.msra.mxu0 0.0
        %396 = vmatprep.mubr.f32.mxu0 0.0
        %397 = vmatmul.mubr.f32.gmra.mrb[0].mxu0 %v330
        %v398 = vpop.f32.mrb[0].mxu0
        %v399 = vadd.f32 0.0, %v398
        %v400 = vpop.f32.mrb[0].mxu0
        %401 = vdwg.mxu0
        %v403 = vsel %vm328, %v318, 0
        %405 = vmatprep.subr.mxu0 0.0
        %406 = vmatpush1.msra.mxu0 %v320
        %407 = vmatprep.subr.mxu0 0.0
        %408 = vmatpush1.msra.mxu0 %v321
        %409 = vmatprep.subr.mxu0 0.0
        %410 = vmatpush1.msra.mxu0 %v322
        %411 = vmatprep.subr.mxu0 0.0
        %412 = vmatpush1.msra.mxu0 %v323
        %413 = vmatprep.subr.mxu0 0.0
        %414 = vmatpush1.msra.mxu0 0.0
        %415 = vmatprep.subr.mxu0 0.0
        %416 = vmatpush1.msra.mxu0 0.0
        %417 = vmatprep.subr.mxu0 0.0
        %418 = vmatpush1.msra.mxu0 0.0
        %419 = vmatprep.subr.mxu0 0.0
        %420 = vmatpush1.msra.mxu0 0.0
        %421 = vmatprep.subr.mxu0 0.0
        %422 = vmatpush1.msra.mxu0 0.0
        %423 = vmatprep.subr.mxu0 0.0
        %424 = vmatpush1.msra.mxu0 0.0
        %425 = vmatprep.subr.mxu0 0.0
        %426 = vmatpush1.msra.mxu0 0.0
        %427 = vmatprep.subr.mxu0 0.0
        %428 = vmatpush1.msra.mxu0 0.0
        %429 = vmatprep.subr.mxu0 0.0
        %430 = vmatpush1.msra.mxu0 0.0
        %431 = vmatprep.subr.mxu0 0.0
        %432 = vmatpush1.msra.mxu0 0.0
        %433 = vmatprep.subr.mxu0 0.0
        %434 = vmatpush1.msra.mxu0 0.0
        %435 = vmatprep.subr.mxu0 0.0
        %436 = vmatpush1.msra.mxu0 0.0
        %437 = vmatprep.subr.mxu0 0.0
        %438 = vmatpush1.msra.mxu0 0.0
        %439 = vmatprep.subr.mxu0 0.0
        %440 = vmatpush1.msra.mxu0 0.0
        %441 = vmatprep.subr.mxu0 0.0
        %442 = vmatpush1.msra.mxu0 0.0
        %443 = vmatprep.subr.mxu0 0.0
        %444 = vmatpush1.msra.mxu0 0.0
        %445 = vmatprep.subr.mxu0 0.0
        %446 = vmatpush1.msra.mxu0 0.0
        %447 = vmatprep.subr.mxu0 0.0
        %448 = vmatpush1.msra.mxu0 0.0
        %449 = vmatprep.subr.mxu0 0.0
        %450 = vmatpush1.msra.mxu0 0.0
        %451 = vmatprep.subr.mxu0 0.0
        %452 = vmatpush1.msra.mxu0 0.0
        %453 = vmatprep.subr.mxu0 0.0
        %454 = vmatpush1.msra.mxu0 0.0
        %455 = vmatprep.subr.mxu0 0.0
        %456 = vmatpush1.msra.mxu0 0.0
        %457 = vmatprep.subr.mxu0 0.0
        %458 = vmatpush1.msra.mxu0 0.0
        %459 = vmatprep.subr.mxu0 0.0
        %460 = vmatpush1.msra.mxu0 0.0
        %461 = vmatprep.subr.mxu0 0.0
        %462 = vmatpush1.msra.mxu0 0.0
        %463 = vmatprep.subr.mxu0 0.0
        %464 = vmatpush1.msra.mxu0 0.0
        %465 = vmatprep.subr.mxu0 0.0
        %466 = vmatpush1.msra.mxu0 0.0
        %467 = vmatprep.subr.mxu0 0.0
        %468 = vmatpush1.msra.mxu0 0.0
        %469 = vmatprep.mubr.f32.mxu0 0.0
        %470 = vmatmul.mubr.f32.gmra.mrb[0].mxu0 %v403
        %v471 = vpop.f32.mrb[0].mxu0
        %v472 = vadd.f32 %v399, %v471
        %v473 = vpop.f32.mrb[0].mxu0
        %474 = vdwg.mxu0
        %v475 = vld [vmem:[#allocation7] sm:$0x1]
        %v476 = vadd.f32 %v472, %v475
        %v477 = vxor.u32 %v476, 2147483648
        %v478 = vmul.f32 %v477, 1.442695
        %v479 = vpow.pop %v478
        %v480 = vadd.f32 %v479, 1.0
        %v481 = vrcp.pop %v480
        %v482 = vmul.f32 1.0, %v481
        %484 = vrot.lane.b32.xlu0 %v476, 32
        %v485 = vpop.permute.xlu0 %484
        %v487 = vmul.f32 %v482, %v485
        %489 = vrot.lane.b32.xlu0 %v487, 64
        %v490 = vpop.permute.xlu0 %489
        %v492 = vadd.f32 %v476, %v490
        %v493 = vtanh.pop %v492
        %v494 = vsub.f32 1.0, %v482
        %496 = vrot.lane.b32.xlu0 %v493, 96
        %v497 = vpop.permute.xlu0 %496
        %v499 = vmul.f32 %v494, %v497
        %v500 = vlaneseq
        %v501 = vshrl.u32 %v500, 7
        %v502 = vsub.s32 0, %v501
        %v503 = vrot.slane %v319, %v502
        %504 = vrot.lane.b32.xlu0 %v503, 32
        %v505 = vpop.permute.xlu0 %504
        %v507 = vmul.f32 %v482, %v505
        %v508 = vadd.f32 %v499, %v507
        %v509 = vld [vmem:[%s4] sm:$0xff]
        %v510 = vld [vmem:[%s4 + $0x8] sm:$0xff]
        %v511 = vld [vmem:[%s4 + $0x10] sm:$0xff]
        %v512 = vld [vmem:[%s4 + $0x18] sm:$0xff]
        %v513 = vld [vmem:[%s4 + $0x20] sm:$0xff]
        %v514 = vld [vmem:[%s4 + $0x28] sm:$0xff]
        %v515 = vld [vmem:[%s4 + $0x30] sm:$0xff]
        %v516 = vld [vmem:[%s4 + $0x38] sm:$0xff]
        %518 = vrot.lane.b32.xlu0 %v508, 96
        %v519 = vpop.permute.xlu0 %518
        %v520 = vsel %vm328, %v519, 0
        %522 = vmatprep.subr.mxu0 %v510
        %523 = vmatpush1.msra.mxu0 %v509
        %524 = vmatprep.subr.mxu0 %v512
        %525 = vmatpush1.msra.mxu0 %v511
        %526 = vmatprep.subr.mxu0 %v514
        %527 = vmatpush1.msra.mxu0 %v513
        %528 = vmatprep.subr.mxu0 %v516
        %529 = vmatpush1.msra.mxu0 %v515
        %530 = vmatprep.subr.mxu0 0.0
        %531 = vmatpush1.msra.mxu0 0.0
        %532 = vmatprep.subr.mxu0 0.0
        %533 = vmatpush1.msra.mxu0 0.0
        %534 = vmatprep.subr.mxu0 0.0
        %535 = vmatpush1.msra.mxu0 0.0
        %536 = vmatprep.subr.mxu0 0.0
        %537 = vmatpush1.msra.mxu0 0.0
        %538 = vmatprep.subr.mxu0 0.0
        %539 = vmatpush1.msra.mxu0 0.0
        %540 = vmatprep.subr.mxu0 0.0
        %541 = vmatpush1.msra.mxu0 0.0
        %542 = vmatprep.subr.mxu0 0.0
        %543 = vmatpush1.msra.mxu0 0.0
        %544 = vmatprep.subr.mxu0 0.0
        %545 = vmatpush1.msra.mxu0 0.0
        %546 = vmatprep.subr.mxu0 0.0
        %547 = vmatpush1.msra.mxu0 0.0
        %548 = vmatprep.subr.mxu0 0.0
        %549 = vmatpush1.msra.mxu0 0.0
        %550 = vmatprep.subr.mxu0 0.0
        %551 = vmatpush1.msra.mxu0 0.0
        %552 = vmatprep.subr.mxu0 0.0
        %553 = vmatpush1.msra.mxu0 0.0
        %554 = vmatprep.subr.mxu0 0.0
        %555 = vmatpush1.msra.mxu0 0.0
        %556 = vmatprep.subr.mxu0 0.0
        %557 = vmatpush1.msra.mxu0 0.0
        %558 = vmatprep.subr.mxu0 0.0
        %559 = vmatpush1.msra.mxu0 0.0
        %560 = vmatprep.subr.mxu0 0.0
        %561 = vmatpush1.msra.mxu0 0.0
        %562 = vmatprep.subr.mxu0 0.0
        %563 = vmatpush1.msra.mxu0 0.0
        %564 = vmatprep.subr.mxu0 0.0
        %565 = vmatpush1.msra.mxu0 0.0
        %566 = vmatprep.subr.mxu0 0.0
        %567 = vmatpush1.msra.mxu0 0.0
        %568 = vmatprep.subr.mxu0 0.0
        %569 = vmatpush1.msra.mxu0 0.0
        %570 = vmatprep.subr.mxu0 0.0
        %571 = vmatpush1.msra.mxu0 0.0
        %572 = vmatprep.subr.mxu0 0.0
        %573 = vmatpush1.msra.mxu0 0.0
        %574 = vmatprep.subr.mxu0 0.0
        %575 = vmatpush1.msra.mxu0 0.0
        %576 = vmatprep.subr.mxu0 0.0
        %577 = vmatpush1.msra.mxu0 0.0
        %578 = vmatprep.subr.mxu0 0.0
        %579 = vmatpush1.msra.mxu0 0.0
        %580 = vmatprep.subr.mxu0 0.0
        %581 = vmatpush1.msra.mxu0 0.0
        %582 = vmatprep.subr.mxu0 0.0
        %583 = vmatpush1.msra.mxu0 0.0
        %584 = vmatprep.subr.mxu0 0.0
        %585 = vmatpush1.msra.mxu0 0.0
        %586 = vmatprep.mubr.f32.mxu0 0.0
        %587 = vmatmul.mubr.f32.gmra.mrb[0].mxu0 %v520
        %v588 = vpop.f32.mrb[0].mxu0
        %v589 = vadd.f32 0.0, %v588
        %v590 = vpop.f32.mrb[0].mxu0
        %v591 = vadd.f32 0.0, %v590
        %592 = vdwg.mxu0
        %v593 = vld [vmem:[#allocation7 + $0x1] sm:$0x1]
        %v594 = vadd.f32 %v589, %v593
        %vm595 = vcmask 73728
        %v596 = vsel %vm595, %v594, -inf
        %597 = vmax.xlane.f32.xlu0 %v596
        %v598 = vpop.xlane.xlu0 %597
        %v599 = vsub.f32 %v594, %v598
        %v600 = vmul.f32 %v599, 1.442695
        %v601 = vpow.pop %v600
        %v602 = vsel %vm595, %v601, 0.0
        %603 = vadd.xlane.f32.xlu0 %v602
        %v604 = vpop.xlane.xlu0 %603
        %v605 = vrcp.pop %v604
        %v606 = vmul.f32 %v601, %v605
        %v607 = vld [vmem:[%s5] sm:$0xff]
        %v608 = vld [vmem:[%s5 + $0x8] sm:$0x3]
        %vm609 = vcmask 80896
        %v611 = vsel %vm609, %v606, 0
        %vm613 = vcmask 1041408
        %v615 = vsel %vm613, %v608, 0
        %617 = vmatprep.subr.mxu0 0.0
        %618 = vmatpush1.msra.mxu0 %v607
        %619 = vmatprep.subr.mxu0 0.0
        %620 = vmatpush1.msra.mxu0 %v615
        %621 = vmatprep.subr.mxu0 0.0
        %622 = vmatpush1.msra.mxu0 0.0
        %623 = vmatprep.subr.mxu0 0.0
        %624 = vmatpush1.msra.mxu0 0.0
        %625 = vmatprep.subr.mxu0 0.0
        %626 = vmatpush1.msra.mxu0 0.0
        %627 = vmatprep.subr.mxu0 0.0
        %628 = vmatpush1.msra.mxu0 0.0
        %629 = vmatprep.subr.mxu0 0.0
        %630 = vmatpush1.msra.mxu0 0.0
        %631 = vmatprep.subr.mxu0 0.0
        %632 = vmatpush1.msra.mxu0 0.0
        %633 = vmatprep.subr.mxu0 0.0
        %634 = vmatpush1.msra.mxu0 0.0
        %635 = vmatprep.subr.mxu0 0.0
        %636 = vmatpush1.msra.mxu0 0.0
        %637 = vmatprep.subr.mxu0 0.0
        %638 = vmatpush1.msra.mxu0 0.0
        %639 = vmatprep.subr.mxu0 0.0
        %640 = vmatpush1.msra.mxu0 0.0
        %641 = vmatprep.subr.mxu0 0.0
        %642 = vmatpush1.msra.mxu0 0.0
        %643 = vmatprep.subr.mxu0 0.0
        %644 = vmatpush1.msra.mxu0 0.0
        %645 = vmatprep.subr.mxu0 0.0
        %646 = vmatpush1.msra.mxu0 0.0
        %647 = vmatprep.subr.mxu0 0.0
        %648 = vmatpush1.msra.mxu0 0.0
        %649 = vmatprep.subr.mxu0 0.0
        %650 = vmatpush1.msra.mxu0 0.0
        %651 = vmatprep.subr.mxu0 0.0
        %652 = vmatpush1.msra.mxu0 0.0
        %653 = vmatprep.subr.mxu0 0.0
        %654 = vmatpush1.msra.mxu0 0.0
        %655 = vmatprep.subr.mxu0 0.0
        %656 = vmatpush1.msra.mxu0 0.0
        %657 = vmatprep.subr.mxu0 0.0
        %658 = vmatpush1.msra.mxu0 0.0
        %659 = vmatprep.subr.mxu0 0.0
        %660 = vmatpush1.msra.mxu0 0.0
        %661 = vmatprep.subr.mxu0 0.0
        %662 = vmatpush1.msra.mxu0 0.0
        %663 = vmatprep.subr.mxu0 0.0
        %664 = vmatpush1.msra.mxu0 0.0
        %665 = vmatprep.subr.mxu0 0.0
        %666 = vmatpush1.msra.mxu0 0.0
        %667 = vmatprep.subr.mxu0 0.0
        %668 = vmatpush1.msra.mxu0 0.0
        %669 = vmatprep.subr.mxu0 0.0
        %670 = vmatpush1.msra.mxu0 0.0
        %671 = vmatprep.subr.mxu0 0.0
        %672 = vmatpush1.msra.mxu0 0.0
        %673 = vmatprep.subr.mxu0 0.0
        %674 = vmatpush1.msra.mxu0 0.0
        %675 = vmatprep.subr.mxu0 0.0
        %676 = vmatpush1.msra.mxu0 0.0
        %677 = vmatprep.subr.mxu0 0.0
        %678 = vmatpush1.msra.mxu0 0.0
        %679 = vmatprep.subr.mxu0 0.0
        %680 = vmatpush1.msra.mxu0 0.0
        %681 = vmatprep.mubr.f32.mxu0 0.0
        %682 = vmatmul.mubr.f32.gmra.mrb[0].mxu0 %v611
        %v683 = vpop.f32.mrb[0].mxu0
        %v684 = vadd.f32 0.0, %v683
        %v685 = vpop.f32.mrb[0].mxu0
        %686 = vdwg.mxu0
        %v687 = vadd.f32 %v591, %v684
        %v688 = vld [vmem:[#allocation7 + $0x2] sm:$0x1]
        %v689 = vadd.f32 %v687, %v688
        %v690 = vmax.f32 %v689, 0.0
        %v691 = vld [vmem:[%s6] sm:$0xff]
        %v692 = vld [vmem:[%s6 + $0x8] sm:$0xff]
        %v693 = vld [vmem:[%s6 + $0x10] sm:$0xff]
        %v694 = vld [vmem:[%s6 + $0x18] sm:$0xff]
        %v695 = vld [vmem:[#allocation7 + $0x3] sm:$0x1]
        %v697 = vsel %vm328, %v690, 0
        %699 = vmatprep.subr.mxu0 0.0
        %700 = vmatpush1.msra.mxu0 %v691
        %701 = vmatprep.subr.mxu0 0.0
        %702 = vmatpush1.msra.mxu0 %v692
        %703 = vmatprep.subr.mxu0 0.0
        %704 = vmatpush1.msra.mxu0 %v693
        %705 = vmatprep.subr.mxu0 0.0
        %706 = vmatpush1.msra.mxu0 %v694
        %707 = vmatprep.subr.mxu0 0.0
        %708 = vmatpush1.msra.mxu0 0.0
        %709 = vmatprep.subr.mxu0 0.0
        %710 = vmatpush1.msra.mxu0 0.0
        %711 = vmatprep.subr.mxu0 0.0
        %712 = vmatpush1.msra.mxu0 0.0
        %713 = vmatprep.subr.mxu0 0.0
        %714 = vmatpush1.msra.mxu0 0.0
        %715 = vmatprep.subr.mxu0 0.0
        %716 = vmatpush1.msra.mxu0 0.0
        %717 = vmatprep.subr.mxu0 0.0
        %718 = vmatpush1.msra.mxu0 0.0
        %719 = vmatprep.subr.mxu0 0.0
        %720 = vmatpush1.msra.mxu0 0.0
        %721 = vmatprep.subr.mxu0 0.0
        %722 = vmatpush1.msra.mxu0 0.0
        %723 = vmatprep.subr.mxu0 0.0
        %724 = vmatpush1.msra.mxu0 0.0
        %725 = vmatprep.subr.mxu0 0.0
        %726 = vmatpush1.msra.mxu0 0.0
        %727 = vmatprep.subr.mxu0 0.0
        %728 = vmatpush1.msra.mxu0 0.0
        %729 = vmatprep.subr.mxu0 0.0
        %730 = vmatpush1.msra.mxu0 0.0
        %731 = vmatprep.subr.mxu0 0.0
        %732 = vmatpush1.msra.mxu0 0.0
        %733 = vmatprep.subr.mxu0 0.0
        %734 = vmatpush1.msra.mxu0 0.0
        %735 = vmatprep.subr.mxu0 0.0
        %736 = vmatpush1.msra.mxu0 0.0
        %737 = vmatprep.subr.mxu0 0.0
        %738 = vmatpush1.msra.mxu0 0.0
        %739 = vmatprep.subr.mxu0 0.0
        %740 = vmatpush1.msra.mxu0 0.0
        %741 = vmatprep.subr.mxu0 0.0
        %742 = vmatpush1.msra.mxu0 0.0
        %743 = vmatprep.subr.mxu0 0.0
        %744 = vmatpush1.msra.mxu0 0.0
        %745 = vmatprep.subr.mxu0 0.0
        %746 = vmatpush1.msra.mxu0 0.0
        %747 = vmatprep.subr.mxu0 0.0
        %748 = vmatpush1.msra.mxu0 0.0
        %749 = vmatprep.subr.mxu0 0.0
        %750 = vmatpush1.msra.mxu0 0.0
        %751 = vmatprep.subr.mxu0 0.0
        %752 = vmatpush1.msra.mxu0 0.0
        %753 = vmatprep.subr.mxu0 0.0
        %754 = vmatpush1.msra.mxu0 0.0
        %755 = vmatprep.subr.mxu0 0.0
        %756 = vmatpush1.msra.mxu0 0.0
        %757 = vmatprep.subr.mxu0 0.0
        %758 = vmatpush1.msra.mxu0 0.0
        %759 = vmatprep.subr.mxu0 0.0
        %760 = vmatpush1.msra.mxu0 0.0
        %761 = vmatprep.subr.mxu0 0.0
        %762 = vmatpush1.msra.mxu0 0.0
        %763 = vmatprep.mubr.f32.mxu0 0.0
        %764 = vmatmul.mubr.f32.gmra.mrb[0].mxu0 %v697
        %v765 = vpop.f32.mrb[0].mxu0
        %v766 = vadd.f32 %v695, %v765
        %v767 = vpop.f32.mrb[0].mxu0
        %768 = vdwg.mxu0
        %vm770 = vcmask 253952
        %771 = vst.msk [vmem:[#allocation2] sm:$0x1] %vm770, %v519
        %vm772 = vcmask 122880
        %773 = vst.msk [vmem:[%s310] sm:$0x1] %vm772, %v766
        %774 = vrot.lane.b32.xlu0 %v508, 112
        %v775 = vpop.permute.xlu0 %774
        %vm777 = vcmask 385152
        %778 = vst.msk [vmem:[%s310] sm:$0x1] %vm777, %v775
        %779 = vrot.lane.b32.xlu0 %v606, 48
        %v780 = vpop.permute.xlu0 %779
        %vm782 = vcmask 467328
        %783 = vst.msk [vmem:[%s310] sm:$0x1] %vm782, %v780
        %p784 = scmp.lt.s32.totalorder %s27, 5
        %s785 = scalar_select %p784, %s27, 5
        %s786 = scalar_lea.vmem %s8, %s785
        // Predicated region
        $region61: #{attn_decoder_decode.1} parent=47 // pred_check
          %p787 = pneg %p199
        $region62: #{attn_decoder_decode.1} parent=47 // pred_check_branch
          %789 = sbr.rel (%p787) target = $region64
        $region63: #{attn_decoder_decode.1} parent=47 // pred_region
          _
        $region64: #{attn_decoder_decode.1} parent=47 // pred_fallthru
          _
      $region48: #{attn_decoder_decode.1} parent=5 // pred_fallthru
        _
      %p790 = scmp.le.s32.totalorder 2, %s22
      // Predicated region
      $region65: #{attn_decoder_decode.1} parent=5 // pred_check
        %p791 = pneg %p790
      $region66: #{attn_decoder_decode.1} parent=5 // pred_check_branch
        %793 = sbr.rel (%p791) target = $region68
      $region67: #{attn_decoder_decode.1} parent=5 // pred_region
        %s794 = ssub.s32 %s22, 2
        // Predicated region
        $region69: #{attn_decoder_decode.1} parent=67 // pred_check
          %p795 = pneg %p205
        $region70: #{attn_decoder_decode.1} parent=67 // pred_check_branch
          %797 = sbr.rel (%p795) target = $region72
        $region71: #{attn_decoder_decode.1} parent=67 // pred_region
          %p798 = scmp.lt.s32.totalorder %s28, 5
          %s799 = scalar_select %p798, %s28, 5
          %s800 = scalar_lea.vmem %s8, %s799
        $region72: #{attn_decoder_decode.1} parent=67 // pred_fallthru
          _
      $region68: #{attn_decoder_decode.1} parent=5 // pred_fallthru
        _
    $region6: #{attn_decoder_decode.1} parent=1 // loop_footer
      %s26 = sadd.s32 1, %s22
    $region7: #{attn_decoder_decode.1} parent=1 // loop_footer_branch
      %21 = sbr.rel target = $region3
    $region8: #{attn_decoder_decode.1} parent=1 // loop_exit
      _
    %801 = vsyncpa [#allocation6], 1
    %s802 = scalar_lea.sflag [#allocation6], 1
    %803 = vsyncpa %s802, 1
    %804 = vsyncpa [#allocation8], 1

</llo_original>
